<compile_context>
chip_gen: v7x
topology: tpu7x:2x2x1
jax: 0.10.0
libtpu: 0.0.40
codegen_flags: <defaults>
</compile_context>

<pallas_src>
import jax
import jax.numpy as jnp
import numpy as np
from jax.experimental import pallas as pl
from jax.experimental.pallas import tpu as pltpu

N_CHANNEL = 8
BATCH = 4


# ---------------------------------------------------------------------------
# Kernel: 8 matmuls + elementwise nonlinearities, all operands already laid
# out so that no transpose / reshape / loop is needed inside the kernel.
# ---------------------------------------------------------------------------
def willie_kernel(x_ref,
                  w1_ref, b1_ref,
                  m1_ref, v1_ref,
                  m2_ref, v2_ref,
                  m3_ref, v3_ref,
                  m4_ref, v4_ref,
                  m5_ref, v5_ref,
                  w2_ref, b2_ref,
                  w3_ref, b3_ref,
                  o_ref):
    f32 = jnp.float32

    def dot(a, w_ref):
        return jnp.dot(a, w_ref[...], preferred_element_type=f32)

    def leaky(v):
        return jnp.where(v >= 0, v, 0.2 * v)

    # Linear(2n, 2n) + Tanh
    h = jnp.tanh(dot(x_ref[...], w1_ref) + b1_ref[...])          # (B, 16)
    # Conv1d(1, n, 1)      + LReLU   (as one dense matmul)
    h = leaky(dot(h, m1_ref) + v1_ref[...])                       # (B, 128)
    # Conv1d(n, n, 2)      + LReLU
    h = leaky(dot(h, m2_ref) + v2_ref[...])                       # (B, 120)
    # Conv1d(n, n, 4, s=2) + LReLU
    h = leaky(dot(h, m3_ref) + v3_ref[...])                       # (B, 48)
    # Conv1d(n, n, 2)      + LReLU
    h = leaky(dot(h, m4_ref) + v4_ref[...])                       # (B, 40)
    # Conv1d(n, n, 2)      + LReLU
    h = leaky(dot(h, m5_ref) + v5_ref[...])                       # (B, 32)
    # Flatten is a no-op (activations already in c*L + l order), then
    # Linear(n*(n-4), 2n) + Tanh
    h = jnp.tanh(dot(h, w2_ref) + b2_ref[...])                    # (B, 16)
    # Linear(2n, 1) + Sigmoid
    o_ref[...] = jax.nn.sigmoid(dot(h, w3_ref) + b3_ref[...])     # (B, 1)


# ---------------------------------------------------------------------------
# One-time parameter preparation (host side, outside the per-call path).
# ---------------------------------------------------------------------------
def _conv_as_dense(w, l_in, stride):
    """Lower a Conv1d weight (Cout, Cin, k) to a dense matrix acting on
    channel-major-flattened activations: column index = cout*Lout + l,
    row index = cin*Lin + j."""
    w = np.asarray(w, np.float32)
    c_out, c_in, k = w.shape
    l_out = (l_in - k) // stride + 1
    m = np.zeros((c_in * l_in, c_out * l_out), np.float32)
    for co in range(c_out):
        for ci in range(c_in):
            for l in range(l_out):
                for t in range(k):
                    m[ci * l_in + stride * l + t, co * l_out + l] = w[co, ci, t]
    return m, l_out


def prepare_params(params):
    (w1, b1, wc1, bc1, wc2, bc2, wc3, bc3,
     wc4, bc4, wc5, bc5, w2, b2, w3, b3) = params
    n = N_CHANNEL

    l = 2 * n
    m1, l = _conv_as_dense(wc1, l, 1); v1 = np.repeat(np.asarray(bc1, np.float32), l)
    m2, l = _conv_as_dense(wc2, l, 1); v2 = np.repeat(np.asarray(bc2, np.float32), l)
    m3, l = _conv_as_dense(wc3, l, 2); v3 = np.repeat(np.asarray(bc3, np.float32), l)
    m4, l = _conv_as_dense(wc4, l, 1); v4 = np.repeat(np.asarray(bc4, np.float32), l)
    m5, l = _conv_as_dense(wc5, l, 1); v5 = np.repeat(np.asarray(bc5, np.float32), l)
    assert l == n - 4

    f32 = jnp.float32
    return (
        jnp.asarray(np.asarray(w1, np.float32).T), jnp.asarray(b1, f32)[None, :],
        jnp.asarray(m1), jnp.asarray(v1)[None, :],
        jnp.asarray(m2), jnp.asarray(v2)[None, :],
        jnp.asarray(m3), jnp.asarray(v3)[None, :],
        jnp.asarray(m4), jnp.asarray(v4)[None, :],
        jnp.asarray(m5), jnp.asarray(v5)[None, :],
        jnp.asarray(np.asarray(w2, np.float32).T), jnp.asarray(b2, f32)[None, :],
        jnp.asarray(np.asarray(w3, np.float32).T), jnp.asarray(b3, f32)[None, :],
    )


# ---------------------------------------------------------------------------
# Wrapper: single pallas_call; batch grid axis is "parallel" so large batches
# shard across TensorCores (v7x).  All operands are 2D and VMEM-resident.
# ---------------------------------------------------------------------------
def willie_forward(x, prepared):
    b = x.shape[0]
    tb = b if b <= 128 else 128
    assert b % tb == 0, "batch must be a multiple of the batch tile"
    grid = (b // tb,)

    x_spec = pl.BlockSpec((tb, x.shape[1]), lambda i: (i, 0))
    weight_specs = [pl.BlockSpec(p.shape, lambda i: (0, 0)) for p in prepared]
    out_spec = pl.BlockSpec((tb, 1), lambda i: (i, 0))

    return pl.pallas_call(
        willie_kernel,
        out_shape=jax.ShapeDtypeStruct((b, 1), jnp.float32),
        grid=grid,
        in_specs=[x_spec] + weight_specs,
        out_specs=out_spec,
        compiler_params=pltpu.CompilerParams(
            dimension_semantics=("parallel",)),
    )(x, *prepared)


# ---------------------------------------------------------------------------
# Plain-JAX reference matching PyTorch (NCL) semantics.
# ---------------------------------------------------------------------------
def willie_reference(x, params):
    (w1, b1, wc1, bc1, wc2, bc2, wc3, bc3,
     wc4, bc4, wc5, bc5, w2, b2, w3, b3) = params
    lrelu = lambda v: jnp.where(v >= 0, v, 0.2 * v)

    def conv(xin, w, b, s):
        y = jax.lax.conv_general_dilated(
            xin, w, (s,), 'VALID', dimension_numbers=('NCH', 'OIH', 'NCH'))
        return y + b[None, :, None]

    h = jnp.tanh(x @ w1.T + b1)
    h = h[:, None, :]
    h = lrelu(conv(h, wc1, bc1, 1))
    h = lrelu(conv(h, wc2, bc2, 1))
    h = lrelu(conv(h, wc3, bc3, 2))
    h = lrelu(conv(h, wc4, bc4, 1))
    h = lrelu(conv(h, wc5, bc5, 1))
    h = h.reshape(h.shape[0], -1)
    h = jnp.tanh(h @ w2.T + b2)
    return jax.nn.sigmoid(h @ w3.T + b3)


def init_params(key):
    n = N_CHANNEL
    shapes = [
        ((2 * n, 2 * n), (2 * n,)),          # Linear(2n, 2n)
        ((n, 1, 1), (n,)),                   # Conv1d(1, n, 1)
        ((n, n, 2), (n,)),                   # Conv1d(n, n, 2)
        ((n, n, 4), (n,)),                   # Conv1d(n, n, 4, stride 2)
        ((n, n, 2), (n,)),                   # Conv1d(n, n, 2)
        ((n, n, 2), (n,)),                   # Conv1d(n, n, 2)
        ((2 * n, n * (n - 4)), (2 * n,)),    # Linear(n*(n-4), 2n)
        ((1, 2 * n), (1,)),                  # Linear(2n, 1)
    ]
    params = []
    for wshape, bshape in shapes:
        key, kw, kb = jax.random.split(key, 3)
        params.append(0.3 * jax.random.normal(kw, wshape, jnp.float32))
        params.append(0.3 * jax.random.normal(kb, bshape, jnp.float32))
    return tuple(params)


if __name__ == "__main__":
    key = jax.random.PRNGKey(0)
    pkey, xkey = jax.random.split(key)
    params = init_params(pkey)
    x = jax.random.normal(xkey, (BATCH, 2 * N_CHANNEL), jnp.float32)

    prepared = prepare_params(params)       # one-time weight repacking

    out = jax.block_until_ready(willie_forward(x, prepared))
    ref = jax.block_until_ready(willie_reference(x, params))

    assert out.shape == (BATCH, 1)
    assert jnp.allclose(out, ref, atol=2e-3, rtol=2e-3), (out, ref)
    print("KERNEL_OK")
</pallas_src>

<mosaic_0001>
module attributes {stable_mosaic.version = 11 : i64} {
  func.func @willie_kernel(%arg0: i32, %arg1: memref<4x16xf32, #tpu.memory_space<vmem>>, %arg2: memref<16x16xf32, #tpu.memory_space<vmem>>, %arg3: memref<1x16xf32, #tpu.memory_space<vmem>>, %arg4: memref<16x128xf32, #tpu.memory_space<vmem>>, %arg5: memref<1x128xf32, #tpu.memory_space<vmem>>, %arg6: memref<128x120xf32, #tpu.memory_space<vmem>>, %arg7: memref<1x120xf32, #tpu.memory_space<vmem>>, %arg8: memref<120x48xf32, #tpu.memory_space<vmem>>, %arg9: memref<1x48xf32, #tpu.memory_space<vmem>>, %arg10: memref<48x40xf32, #tpu.memory_space<vmem>>, %arg11: memref<1x40xf32, #tpu.memory_space<vmem>>, %arg12: memref<40x32xf32, #tpu.memory_space<vmem>>, %arg13: memref<1x32xf32, #tpu.memory_space<vmem>>, %arg14: memref<32x16xf32, #tpu.memory_space<vmem>>, %arg15: memref<1x16xf32, #tpu.memory_space<vmem>>, %arg16: memref<16x1xf32, #tpu.memory_space<vmem>>, %arg17: memref<1x1xf32, #tpu.memory_space<vmem>>, %arg18: memref<4x1xf32, #tpu.memory_space<vmem>>) attributes {dimension_semantics = [#tpu.dimension_semantics<parallel>], iteration_bounds = array<i64: 1>, scalar_prefetch = 0 : i64, scratch_operands = 0 : i64, tpu.core_type = #tpu.core_type<tc>, window_params = [{transform_indices = @transform_0, window_bounds = array<i64: 4, 16>}, {pipeline_mode = #tpu.pipeline_mode<synchronous>, transform_indices = @transform_1, window_bounds = array<i64: 16, 16>}, {pipeline_mode = #tpu.pipeline_mode<synchronous>, transform_indices = @transform_2, window_bounds = array<i64: 1, 16>}, {pipeline_mode = #tpu.pipeline_mode<synchronous>, transform_indices = @transform_3, window_bounds = array<i64: 16, 128>}, {pipeline_mode = #tpu.pipeline_mode<synchronous>, transform_indices = @transform_4, window_bounds = array<i64: 1, 128>}, {pipeline_mode = #tpu.pipeline_mode<synchronous>, transform_indices = @transform_5, window_bounds = array<i64: 128, 120>}, {pipeline_mode = #tpu.pipeline_mode<synchronous>, transform_indices = @transform_6, window_bounds = array<i64: 1, 120>}, {pipeline_mode = #tpu.pipeline_mode<synchronous>, transform_indices = @transform_7, window_bounds = array<i64: 120, 48>}, {pipeline_mode = #tpu.pipeline_mode<synchronous>, transform_indices = @transform_8, window_bounds = array<i64: 1, 48>}, {pipeline_mode = #tpu.pipeline_mode<synchronous>, transform_indices = @transform_9, window_bounds = array<i64: 48, 40>}, {pipeline_mode = #tpu.pipeline_mode<synchronous>, transform_indices = @transform_10, window_bounds = array<i64: 1, 40>}, {pipeline_mode = #tpu.pipeline_mode<synchronous>, transform_indices = @transform_11, window_bounds = array<i64: 40, 32>}, {pipeline_mode = #tpu.pipeline_mode<synchronous>, transform_indices = @transform_12, window_bounds = array<i64: 1, 32>}, {pipeline_mode = #tpu.pipeline_mode<synchronous>, transform_indices = @transform_13, window_bounds = array<i64: 32, 16>}, {pipeline_mode = #tpu.pipeline_mode<synchronous>, transform_indices = @transform_14, window_bounds = array<i64: 1, 16>}, {pipeline_mode = #tpu.pipeline_mode<synchronous>, transform_indices = @transform_15, window_bounds = array<i64: 16, 1>}, {pipeline_mode = #tpu.pipeline_mode<synchronous>, transform_indices = @transform_16, window_bounds = array<i64: 1, 1>}, {transform_indices = @transform_17, window_bounds = array<i64: 4, 1>}]} {
    %c0 = arith.constant 0 : index
    %c0_0 = arith.constant 0 : index
    %0 = vector.load %arg1[%c0, %c0_0] : memref<4x16xf32, #tpu.memory_space<vmem>>, vector<4x16xf32>
    %c0_1 = arith.constant 0 : index
    %c0_2 = arith.constant 0 : index
    %1 = vector.load %arg2[%c0_1, %c0_2] : memref<16x16xf32, #tpu.memory_space<vmem>>, vector<16x16xf32>
    %cst = arith.constant dense<0.000000e+00> : vector<4x16xf32>
    %2 = tpu.matmul %0, %1, %cst {dimension_numbers = #tpu.dot_dimension_numbers<[1], [0], [0], [1], [0, 0, 1, 1], [], []>} : vector<4x16xf32>, vector<16x16xf32>, vector<4x16xf32> -> vector<4x16xf32>
    %c0_3 = arith.constant 0 : index
    %c0_4 = arith.constant 0 : index
    %3 = vector.load %arg3[%c0_3, %c0_4] : memref<1x16xf32, #tpu.memory_space<vmem>>, vector<1x16xf32>
    %4 = vector.broadcast %3 : vector<1x16xf32> to vector<4x16xf32>
    %5 = arith.addf %2, %4 : vector<4x16xf32>
    %6 = math.tanh %5 : vector<4x16xf32>
    %c0_5 = arith.constant 0 : index
    %c0_6 = arith.constant 0 : index
    %7 = vector.load %arg4[%c0_5, %c0_6] : memref<16x128xf32, #tpu.memory_space<vmem>>, vector<16x128xf32>
    %cst_7 = arith.constant dense<0.000000e+00> : vector<4x128xf32>
    %8 = tpu.matmul %6, %7, %cst_7 {dimension_numbers = #tpu.dot_dimension_numbers<[1], [0], [0], [1], [0, 0, 1, 1], [], []>} : vector<4x16xf32>, vector<16x128xf32>, vector<4x128xf32> -> vector<4x128xf32>
    %c0_8 = arith.constant 0 : index
    %c0_9 = arith.constant 0 : index
    %9 = vector.load %arg5[%c0_8, %c0_9] : memref<1x128xf32, #tpu.memory_space<vmem>>, vector<1x128xf32>
    %10 = vector.broadcast %9 : vector<1x128xf32> to vector<4x128xf32>
    %11 = arith.addf %8, %10 : vector<4x128xf32>
    %cst_10 = arith.constant 0.000000e+00 : f32
    %12 = vector.broadcast %cst_10 : f32 to vector<4x128xf32>
    %13 = arith.cmpf oge, %11, %12 : vector<4x128xf32>
    %cst_11 = arith.constant 2.000000e-01 : f32
    %14 = vector.broadcast %cst_11 : f32 to vector<4x128xf32>
    %15 = arith.mulf %14, %11 : vector<4x128xf32>
    %16 = arith.select %13, %11, %15 : vector<4x128xi1>, vector<4x128xf32>
    %c0_12 = arith.constant 0 : index
    %c0_13 = arith.constant 0 : index
    %17 = vector.load %arg6[%c0_12, %c0_13] : memref<128x120xf32, #tpu.memory_space<vmem>>, vector<128x120xf32>
    %cst_14 = arith.constant dense<0.000000e+00> : vector<4x120xf32>
    %18 = tpu.matmul %16, %17, %cst_14 {dimension_numbers = #tpu.dot_dimension_numbers<[1], [0], [0], [1], [0, 0, 1, 1], [], []>} : vector<4x128xf32>, vector<128x120xf32>, vector<4x120xf32> -> vector<4x120xf32>
    %c0_15 = arith.constant 0 : index
    %c0_16 = arith.constant 0 : index
    %19 = vector.load %arg7[%c0_15, %c0_16] : memref<1x120xf32, #tpu.memory_space<vmem>>, vector<1x120xf32>
    %20 = vector.broadcast %19 : vector<1x120xf32> to vector<4x120xf32>
    %21 = arith.addf %18, %20 : vector<4x120xf32>
    %cst_17 = arith.constant 0.000000e+00 : f32
    %22 = vector.broadcast %cst_17 : f32 to vector<4x120xf32>
    %23 = arith.cmpf oge, %21, %22 : vector<4x120xf32>
    %cst_18 = arith.constant 2.000000e-01 : f32
    %24 = vector.broadcast %cst_18 : f32 to vector<4x120xf32>
    %25 = arith.mulf %24, %21 : vector<4x120xf32>
    %26 = arith.select %23, %21, %25 : vector<4x120xi1>, vector<4x120xf32>
    %c0_19 = arith.constant 0 : index
    %c0_20 = arith.constant 0 : index
    %27 = vector.load %arg8[%c0_19, %c0_20] : memref<120x48xf32, #tpu.memory_space<vmem>>, vector<120x48xf32>
    %cst_21 = arith.constant dense<0.000000e+00> : vector<4x48xf32>
    %28 = tpu.matmul %26, %27, %cst_21 {dimension_numbers = #tpu.dot_dimension_numbers<[1], [0], [0], [1], [0, 0, 1, 1], [], []>} : vector<4x120xf32>, vector<120x48xf32>, vector<4x48xf32> -> vector<4x48xf32>
    %c0_22 = arith.constant 0 : index
    %c0_23 = arith.constant 0 : index
    %29 = vector.load %arg9[%c0_22, %c0_23] : memref<1x48xf32, #tpu.memory_space<vmem>>, vector<1x48xf32>
    %30 = vector.broadcast %29 : vector<1x48xf32> to vector<4x48xf32>
    %31 = arith.addf %28, %30 : vector<4x48xf32>
    %cst_24 = arith.constant 0.000000e+00 : f32
    %32 = vector.broadcast %cst_24 : f32 to vector<4x48xf32>
    %33 = arith.cmpf oge, %31, %32 : vector<4x48xf32>
    %cst_25 = arith.constant 2.000000e-01 : f32
    %34 = vector.broadcast %cst_25 : f32 to vector<4x48xf32>
    %35 = arith.mulf %34, %31 : vector<4x48xf32>
    %36 = arith.select %33, %31, %35 : vector<4x48xi1>, vector<4x48xf32>
    %c0_26 = arith.constant 0 : index
    %c0_27 = arith.constant 0 : index
    %37 = vector.load %arg10[%c0_26, %c0_27] : memref<48x40xf32, #tpu.memory_space<vmem>>, vector<48x40xf32>
    %cst_28 = arith.constant dense<0.000000e+00> : vector<4x40xf32>
    %38 = tpu.matmul %36, %37, %cst_28 {dimension_numbers = #tpu.dot_dimension_numbers<[1], [0], [0], [1], [0, 0, 1, 1], [], []>} : vector<4x48xf32>, vector<48x40xf32>, vector<4x40xf32> -> vector<4x40xf32>
    %c0_29 = arith.constant 0 : index
    %c0_30 = arith.constant 0 : index
    %39 = vector.load %arg11[%c0_29, %c0_30] : memref<1x40xf32, #tpu.memory_space<vmem>>, vector<1x40xf32>
    %40 = vector.broadcast %39 : vector<1x40xf32> to vector<4x40xf32>
    %41 = arith.addf %38, %40 : vector<4x40xf32>
    %cst_31 = arith.constant 0.000000e+00 : f32
    %42 = vector.broadcast %cst_31 : f32 to vector<4x40xf32>
    %43 = arith.cmpf oge, %41, %42 : vector<4x40xf32>
    %cst_32 = arith.constant 2.000000e-01 : f32
    %44 = vector.broadcast %cst_32 : f32 to vector<4x40xf32>
    %45 = arith.mulf %44, %41 : vector<4x40xf32>
    %46 = arith.select %43, %41, %45 : vector<4x40xi1>, vector<4x40xf32>
    %c0_33 = arith.constant 0 : index
    %c0_34 = arith.constant 0 : index
    %47 = vector.load %arg12[%c0_33, %c0_34] : memref<40x32xf32, #tpu.memory_space<vmem>>, vector<40x32xf32>
    %cst_35 = arith.constant dense<0.000000e+00> : vector<4x32xf32>
    %48 = tpu.matmul %46, %47, %cst_35 {dimension_numbers = #tpu.dot_dimension_numbers<[1], [0], [0], [1], [0, 0, 1, 1], [], []>} : vector<4x40xf32>, vector<40x32xf32>, vector<4x32xf32> -> vector<4x32xf32>
    %c0_36 = arith.constant 0 : index
    %c0_37 = arith.constant 0 : index
    %49 = vector.load %arg13[%c0_36, %c0_37] : memref<1x32xf32, #tpu.memory_space<vmem>>, vector<1x32xf32>
    %50 = vector.broadcast %49 : vector<1x32xf32> to vector<4x32xf32>
    %51 = arith.addf %48, %50 : vector<4x32xf32>
    %cst_38 = arith.constant 0.000000e+00 : f32
    %52 = vector.broadcast %cst_38 : f32 to vector<4x32xf32>
    %53 = arith.cmpf oge, %51, %52 : vector<4x32xf32>
    %cst_39 = arith.constant 2.000000e-01 : f32
    %54 = vector.broadcast %cst_39 : f32 to vector<4x32xf32>
    %55 = arith.mulf %54, %51 : vector<4x32xf32>
    %56 = arith.select %53, %51, %55 : vector<4x32xi1>, vector<4x32xf32>
    %c0_40 = arith.constant 0 : index
    %c0_41 = arith.constant 0 : index
    %57 = vector.load %arg14[%c0_40, %c0_41] : memref<32x16xf32, #tpu.memory_space<vmem>>, vector<32x16xf32>
    %cst_42 = arith.constant dense<0.000000e+00> : vector<4x16xf32>
    %58 = tpu.matmul %56, %57, %cst_42 {dimension_numbers = #tpu.dot_dimension_numbers<[1], [0], [0], [1], [0, 0, 1, 1], [], []>} : vector<4x32xf32>, vector<32x16xf32>, vector<4x16xf32> -> vector<4x16xf32>
    %c0_43 = arith.constant 0 : index
    %c0_44 = arith.constant 0 : index
    %59 = vector.load %arg15[%c0_43, %c0_44] : memref<1x16xf32, #tpu.memory_space<vmem>>, vector<1x16xf32>
    %60 = vector.broadcast %59 : vector<1x16xf32> to vector<4x16xf32>
    %61 = arith.addf %58, %60 : vector<4x16xf32>
    %62 = math.tanh %61 : vector<4x16xf32>
    %c0_45 = arith.constant 0 : index
    %c0_46 = arith.constant 0 : index
    %63 = vector.load %arg16[%c0_45, %c0_46] : memref<16x1xf32, #tpu.memory_space<vmem>>, vector<16x1xf32>
    %cst_47 = arith.constant dense<0.000000e+00> : vector<4x1xf32>
    %64 = tpu.matmul %62, %63, %cst_47 {dimension_numbers = #tpu.dot_dimension_numbers<[1], [0], [0], [1], [0, 0, 1, 1], [], []>} : vector<4x16xf32>, vector<16x1xf32>, vector<4x1xf32> -> vector<4x1xf32>
    %c0_48 = arith.constant 0 : index
    %c0_49 = arith.constant 0 : index
    %65 = vector.load %arg17[%c0_48, %c0_49] : memref<1x1xf32, #tpu.memory_space<vmem>>, vector<1x1xf32>
    %66 = vector.broadcast %65 : vector<1x1xf32> to vector<4x1xf32>
    %67 = arith.addf %64, %66 : vector<4x1xf32>
    %68 = arith.negf %67 : vector<4x1xf32>
    %69 = math.exp %68 : vector<4x1xf32>
    %cst_50 = arith.constant 1.000000e+00 : f32
    %70 = vector.broadcast %cst_50 : f32 to vector<4x1xf32>
    %71 = arith.addf %70, %69 : vector<4x1xf32>
    %72 = arith.divf %70, %71 : vector<4x1xf32>
    %c0_51 = arith.constant 0 : index
    %c0_52 = arith.constant 0 : index
    %73 = vector.load %arg18[%c0_51, %c0_52] : memref<4x1xf32, #tpu.memory_space<vmem>>, vector<4x1xf32>
    tpu.vector_store %arg18[%c0_51, %c0_52], %72 {strides = array<i32>} : memref<4x1xf32, #tpu.memory_space<vmem>>, vector<4x1xf32>,
    return
  }
  func.func @transform_0(%arg0: i32) -> (i32, i32) {
    %c0_i32 = arith.constant 0 : i32
    %c0_i32_0 = arith.constant 0 : i32
    return %arg0, %c0_i32 : i32, i32
  }
  func.func @transform_1(%arg0: i32) -> (i32, i32) {
    %c0_i32 = arith.constant 0 : i32
    %c0_i32_0 = arith.constant 0 : i32
    %c0_i32_1 = arith.constant 0 : i32
    return %c0_i32, %c0_i32_0 : i32, i32
  }
  func.func @transform_2(%arg0: i32) -> (i32, i32) {
    %c0_i32 = arith.constant 0 : i32
    %c0_i32_0 = arith.constant 0 : i32
    %c0_i32_1 = arith.constant 0 : i32
    return %c0_i32, %c0_i32_0 : i32, i32
  }
  func.func @transform_3(%arg0: i32) -> (i32, i32) {
    %c0_i32 = arith.constant 0 : i32
    %c0_i32_0 = arith.constant 0 : i32
    %c0_i32_1 = arith.constant 0 : i32
    return %c0_i32, %c0_i32_0 : i32, i32
  }
  func.func @transform_4(%arg0: i32) -> (i32, i32) {
    %c0_i32 = arith.constant 0 : i32
    %c0_i32_0 = arith.constant 0 : i32
    %c0_i32_1 = arith.constant 0 : i32
    return %c0_i32, %c0_i32_0 : i32, i32
  }
  func.func @transform_5(%arg0: i32) -> (i32, i32) {
    %c0_i32 = arith.constant 0 : i32
    %c0_i32_0 = arith.constant 0 : i32
    %c0_i32_1 = arith.constant 0 : i32
    return %c0_i32, %c0_i32_0 : i32, i32
  }
  func.func @transform_6(%arg0: i32) -> (i32, i32) {
    %c0_i32 = arith.constant 0 : i32
    %c0_i32_0 = arith.constant 0 : i32
    %c0_i32_1 = arith.constant 0 : i32
    return %c0_i32, %c0_i32_0 : i32, i32
  }
  func.func @transform_7(%arg0: i32) -> (i32, i32) {
    %c0_i32 = arith.constant 0 : i32
    %c0_i32_0 = arith.constant 0 : i32
    %c0_i32_1 = arith.constant 0 : i32
    return %c0_i32, %c0_i32_0 : i32, i32
  }
  func.func @transform_8(%arg0: i32) -> (i32, i32) {
    %c0_i32 = arith.constant 0 : i32
    %c0_i32_0 = arith.constant 0 : i32
    %c0_i32_1 = arith.constant 0 : i32
    return %c0_i32, %c0_i32_0 : i32, i32
  }
  func.func @transform_9(%arg0: i32) -> (i32, i32) {
    %c0_i32 = arith.constant 0 : i32
    %c0_i32_0 = arith.constant 0 : i32
    %c0_i32_1 = arith.constant 0 : i32
    return %c0_i32, %c0_i32_0 : i32, i32
  }
  func.func @transform_10(%arg0: i32) -> (i32, i32) {
    %c0_i32 = arith.constant 0 : i32
    %c0_i32_0 = arith.constant 0 : i32
    %c0_i32_1 = arith.constant 0 : i32
    return %c0_i32, %c0_i32_0 : i32, i32
  }
  func.func @transform_11(%arg0: i32) -> (i32, i32) {
    %c0_i32 = arith.constant 0 : i32
    %c0_i32_0 = arith.constant 0 : i32
    %c0_i32_1 = arith.constant 0 : i32
    return %c0_i32, %c0_i32_0 : i32, i32
  }
  func.func @transform_12(%arg0: i32) -> (i32, i32) {
    %c0_i32 = arith.constant 0 : i32
    %c0_i32_0 = arith.constant 0 : i32
    %c0_i32_1 = arith.constant 0 : i32
    return %c0_i32, %c0_i32_0 : i32, i32
  }
  func.func @transform_13(%arg0: i32) -> (i32, i32) {
    %c0_i32 = arith.constant 0 : i32
    %c0_i32_0 = arith.constant 0 : i32
    %c0_i32_1 = arith.constant 0 : i32
    return %c0_i32, %c0_i32_0 : i32, i32
  }
  func.func @transform_14(%arg0: i32) -> (i32, i32) {
    %c0_i32 = arith.constant 0 : i32
    %c0_i32_0 = arith.constant 0 : i32
    %c0_i32_1 = arith.constant 0 : i32
    return %c0_i32, %c0_i32_0 : i32, i32
  }
  func.func @transform_15(%arg0: i32) -> (i32, i32) {
    %c0_i32 = arith.constant 0 : i32
    %c0_i32_0 = arith.constant 0 : i32
    %c0_i32_1 = arith.constant 0 : i32
    return %c0_i32, %c0_i32_0 : i32, i32
  }
  func.func @transform_16(%arg0: i32) -> (i32, i32) {
    %c0_i32 = arith.constant 0 : i32
    %c0_i32_0 = arith.constant 0 : i32
    %c0_i32_1 = arith.constant 0 : i32
    return %c0_i32, %c0_i32_0 : i32, i32
  }
  func.func @transform_17(%arg0: i32) -> (i32, i32) {
    %c0_i32 = arith.constant 0 : i32
    %c0_i32_0 = arith.constant 0 : i32
    return %arg0, %c0_i32 : i32, i32
  }
}

</mosaic_0001>

<llo_original>
// kernel: tpu_custom_call.1
$region0: #{tpu_custom_call.1}
  #allocation0 [shape = 'u32[]', space=smem, size = 0x4, offset = 0x4, fixed_abs, tag = 'smem constant byte address 0x4 - core index']
  #allocation1 [shape = 'u32[144,128]{1,0:T(1,128)}', space=vmem, size = 0x12000, scoped, tag = 'internal scratch']
  #allocation2 [shape = 'f32[1,1]{1,0:T(1,128)S(1)}', space=vmem, size = 0x200, scoped, tag = 'scoped memory for tpu_custom_call.1']
  %s0 = inlined_call_operand.vmem [shape: f32[4,16], index: 0, kind: input, shape index: {}]
  %s1 = inlined_call_operand.vmem [shape: f32[16,16], index: 1, kind: input, shape index: {}]
  %s2 = inlined_call_operand.vmem [shape: f32[1,16], index: 2, kind: input, shape index: {}]
  %s3 = inlined_call_operand.vmem [shape: f32[16,128], index: 3, kind: input, shape index: {}]
  %s4 = inlined_call_operand.vmem [shape: f32[1,128], index: 4, kind: input, shape index: {}]
  %s5 = inlined_call_operand.vmem [shape: f32[128,120], index: 5, kind: input, shape index: {}]
  %s6 = inlined_call_operand.vmem [shape: f32[1,120], index: 6, kind: input, shape index: {}]
  %s7 = inlined_call_operand.vmem [shape: f32[120,48], index: 7, kind: input, shape index: {}]
  %s8 = inlined_call_operand.vmem [shape: f32[1,48], index: 8, kind: input, shape index: {}]
  %s9 = inlined_call_operand.vmem [shape: f32[48,40], index: 9, kind: input, shape index: {}]
  %s10 = inlined_call_operand.vmem [shape: f32[1,40], index: 10, kind: input, shape index: {}]
  %s11 = inlined_call_operand.vmem [shape: f32[40,32], index: 11, kind: input, shape index: {}]
  %s12 = inlined_call_operand.vmem [shape: f32[1,32], index: 12, kind: input, shape index: {}]
  %s13 = inlined_call_operand.vmem [shape: f32[32,16], index: 13, kind: input, shape index: {}]
  %s14 = inlined_call_operand.vmem [shape: f32[1,16], index: 14, kind: input, shape index: {}]
  %s15 = inlined_call_operand.vmem [shape: f32[16,1], index: 15, kind: input, shape index: {}]
  %s16 = inlined_call_operand.<no memory space> [shape: f32[1,1], index: 16, kind: input, shape index: {}]
  %s17 = inlined_call_operand.vmem [shape: f32[4,1], index: 17, kind: output, shape index: {}]
  %s18 = sld [smem:[#allocation0]]
  $region78: #{tpu_custom_call.1} parent=0
    _
  %s20 = ssub.s32 1, %s18
  %s21 = scalar_select 0, %s20, %s18
  %v22 = vstv %s16
  %23 = vst [vmem:[#allocation2] sm:$0x1] %v22
  // Predicated region
  $region2: #{tpu_custom_call.1} parent=0 // pred_check
    _
  $region3: #{tpu_custom_call.1} parent=0 // pred_check_branch
    %25 = sbr.rel (0) target = $region5
  $region4: #{tpu_custom_call.1} parent=0 // pred_region
    _
  $region5: #{tpu_custom_call.1} parent=0 // pred_fallthru
    _
  // Predicated region
  $region6: #{tpu_custom_call.1} parent=0 // pred_check
    _
  $region7: #{tpu_custom_call.1} parent=0 // pred_check_branch
    %27 = sbr.rel (0) target = $region9
  $region8: #{tpu_custom_call.1} parent=0 // pred_region
    _
  $region9: #{tpu_custom_call.1} parent=0 // pred_fallthru
    _
  // Predicated region
  $region10: #{tpu_custom_call.1} parent=0 // pred_check
    _
  $region11: #{tpu_custom_call.1} parent=0 // pred_check_branch
    %29 = sbr.rel (0) target = $region13
  $region12: #{tpu_custom_call.1} parent=0 // pred_region
    _
  $region13: #{tpu_custom_call.1} parent=0 // pred_fallthru
    _
  // Predicated region
  $region14: #{tpu_custom_call.1} parent=0 // pred_check
    _
  $region15: #{tpu_custom_call.1} parent=0 // pred_check_branch
    %31 = sbr.rel (0) target = $region17
  $region16: #{tpu_custom_call.1} parent=0 // pred_region
    _
  $region17: #{tpu_custom_call.1} parent=0 // pred_fallthru
    _
  // Predicated region
  $region18: #{tpu_custom_call.1} parent=0 // pred_check
    _
  $region19: #{tpu_custom_call.1} parent=0 // pred_check_branch
    %33 = sbr.rel (0) target = $region21
  $region20: #{tpu_custom_call.1} parent=0 // pred_region
    _
  $region21: #{tpu_custom_call.1} parent=0 // pred_fallthru
    _
  // Predicated region
  $region22: #{tpu_custom_call.1} parent=0 // pred_check
    _
  $region23: #{tpu_custom_call.1} parent=0 // pred_check_branch
    %35 = sbr.rel (0) target = $region25
  $region24: #{tpu_custom_call.1} parent=0 // pred_region
    _
  $region25: #{tpu_custom_call.1} parent=0 // pred_fallthru
    _
  // Predicated region
  $region26: #{tpu_custom_call.1} parent=0 // pred_check
    _
  $region27: #{tpu_custom_call.1} parent=0 // pred_check_branch
    %37 = sbr.rel (0) target = $region29
  $region28: #{tpu_custom_call.1} parent=0 // pred_region
    _
  $region29: #{tpu_custom_call.1} parent=0 // pred_fallthru
    _
  // Predicated region
  $region30: #{tpu_custom_call.1} parent=0 // pred_check
    _
  $region31: #{tpu_custom_call.1} parent=0 // pred_check_branch
    %39 = sbr.rel (0) target = $region33
  $region32: #{tpu_custom_call.1} parent=0 // pred_region
    _
  $region33: #{tpu_custom_call.1} parent=0 // pred_fallthru
    _
  // Predicated region
  $region34: #{tpu_custom_call.1} parent=0 // pred_check
    _
  $region35: #{tpu_custom_call.1} parent=0 // pred_check_branch
    %41 = sbr.rel (0) target = $region37
  $region36: #{tpu_custom_call.1} parent=0 // pred_region
    _
  $region37: #{tpu_custom_call.1} parent=0 // pred_fallthru
    _
  // Predicated region
  $region38: #{tpu_custom_call.1} parent=0 // pred_check
    _
  $region39: #{tpu_custom_call.1} parent=0 // pred_check_branch
    %43 = sbr.rel (0) target = $region41
  $region40: #{tpu_custom_call.1} parent=0 // pred_region
    _
  $region41: #{tpu_custom_call.1} parent=0 // pred_fallthru
    _
  // Predicated region
  $region42: #{tpu_custom_call.1} parent=0 // pred_check
    _
  $region43: #{tpu_custom_call.1} parent=0 // pred_check_branch
    %45 = sbr.rel (0) target = $region45
  $region44: #{tpu_custom_call.1} parent=0 // pred_region
    _
  $region45: #{tpu_custom_call.1} parent=0 // pred_fallthru
    _
  // Predicated region
  $region46: #{tpu_custom_call.1} parent=0 // pred_check
    _
  $region47: #{tpu_custom_call.1} parent=0 // pred_check_branch
    %47 = sbr.rel (0) target = $region49
  $region48: #{tpu_custom_call.1} parent=0 // pred_region
    _
  $region49: #{tpu_custom_call.1} parent=0 // pred_fallthru
    _
  // Predicated region
  $region50: #{tpu_custom_call.1} parent=0 // pred_check
    _
  $region51: #{tpu_custom_call.1} parent=0 // pred_check_branch
    %49 = sbr.rel (0) target = $region53
  $region52: #{tpu_custom_call.1} parent=0 // pred_region
    _
  $region53: #{tpu_custom_call.1} parent=0 // pred_fallthru
    _
  // Predicated region
  $region54: #{tpu_custom_call.1} parent=0 // pred_check
    _
  $region55: #{tpu_custom_call.1} parent=0 // pred_check_branch
    %51 = sbr.rel (0) target = $region57
  $region56: #{tpu_custom_call.1} parent=0 // pred_region
    _
  $region57: #{tpu_custom_call.1} parent=0 // pred_fallthru
    _
  // Predicated region
  $region58: #{tpu_custom_call.1} parent=0 // pred_check
    _
  $region59: #{tpu_custom_call.1} parent=0 // pred_check_branch
    %53 = sbr.rel (0) target = $region61
  $region60: #{tpu_custom_call.1} parent=0 // pred_region
    _
  $region61: #{tpu_custom_call.1} parent=0 // pred_fallthru
    _
  // Predicated region
  $region62: #{tpu_custom_call.1} parent=0 // pred_check
    _
  $region63: #{tpu_custom_call.1} parent=0 // pred_check_branch
    %55 = sbr.rel (0) target = $region65
  $region64: #{tpu_custom_call.1} parent=0 // pred_region
    _
  $region65: #{tpu_custom_call.1} parent=0 // pred_fallthru
    _
  // Predicated region
  $region66: #{tpu_custom_call.1} parent=0 // pred_check
    _
  $region67: #{tpu_custom_call.1} parent=0 // pred_check_branch
    %57 = sbr.rel (0) target = $region69
  $region68: #{tpu_custom_call.1} parent=0 // pred_region
    _
  $region69: #{tpu_custom_call.1} parent=0 // pred_fallthru
    _
  %v58 = vld [vmem:[%s0] sm:$0xf]
  %v59 = vld [vmem:[%s1] sm:$0xff]
  %v60 = vld [vmem:[%s1 + $0x8] sm:$0xff]
  %v61 = vld [vmem:[%s2] sm:$0x1]
  %v63 = vlaneseq
  %v64 = vshrl.u32 %v63, 7
  %v65 = vsub.s32 0, %v64
  %v66 = vrot.slane %v61, %v65
  %vm68 = vcmask 130048
  %v70 = vsel %vm68, %v58, 0
  %72 = vmatprep.subr.mxu0 0.0
  %73 = vmatpush1.msra.mxu0 %v59
  %74 = vmatprep.subr.mxu0 0.0
  %75 = vmatpush1.msra.mxu0 %v60
  %76 = vmatprep.subr.mxu0 0.0
  %77 = vmatpush1.msra.mxu0 0.0
  %78 = vmatprep.subr.mxu0 0.0
  %79 = vmatpush1.msra.mxu0 0.0
  %80 = vmatprep.subr.mxu0 0.0
  %81 = vmatpush1.msra.mxu0 0.0
  %82 = vmatprep.subr.mxu0 0.0
  %83 = vmatpush1.msra.mxu0 0.0
  %84 = vmatprep.subr.mxu0 0.0
  %85 = vmatpush1.msra.mxu0 0.0
  %86 = vmatprep.subr.mxu0 0.0
  %87 = vmatpush1.msra.mxu0 0.0
  %88 = vmatprep.subr.mxu0 0.0
  %89 = vmatpush1.msra.mxu0 0.0
  %90 = vmatprep.subr.mxu0 0.0
  %91 = vmatpush1.msra.mxu0 0.0
  %92 = vmatprep.subr.mxu0 0.0
  %93 = vmatpush1.msra.mxu0 0.0
  %94 = vmatprep.subr.mxu0 0.0
  %95 = vmatpush1.msra.mxu0 0.0
  %96 = vmatprep.subr.mxu0 0.0
  %97 = vmatpush1.msra.mxu0 0.0
  %98 = vmatprep.subr.mxu0 0.0
  %99 = vmatpush1.msra.mxu0 0.0
  %100 = vmatprep.subr.mxu0 0.0
  %101 = vmatpush1.msra.mxu0 0.0
  %102 = vmatprep.subr.mxu0 0.0
  %103 = vmatpush1.msra.mxu0 0.0
  %104 = vmatprep.subr.mxu0 0.0
  %105 = vmatpush1.msra.mxu0 0.0
  %106 = vmatprep.subr.mxu0 0.0
  %107 = vmatpush1.msra.mxu0 0.0
  %108 = vmatprep.subr.mxu0 0.0
  %109 = vmatpush1.msra.mxu0 0.0
  %110 = vmatprep.subr.mxu0 0.0
  %111 = vmatpush1.msra.mxu0 0.0
  %112 = vmatprep.subr.mxu0 0.0
  %113 = vmatpush1.msra.mxu0 0.0
  %114 = vmatprep.subr.mxu0 0.0
  %115 = vmatpush1.msra.mxu0 0.0
  %116 = vmatprep.subr.mxu0 0.0
  %117 = vmatpush1.msra.mxu0 0.0
  %118 = vmatprep.subr.mxu0 0.0
  %119 = vmatpush1.msra.mxu0 0.0
  %120 = vmatprep.subr.mxu0 0.0
  %121 = vmatpush1.msra.mxu0 0.0
  %122 = vmatprep.subr.mxu0 0.0
  %123 = vmatpush1.msra.mxu0 0.0
  %124 = vmatprep.subr.mxu0 0.0
  %125 = vmatpush1.msra.mxu0 0.0
  %126 = vmatprep.subr.mxu0 0.0
  %127 = vmatpush1.msra.mxu0 0.0
  %128 = vmatprep.subr.mxu0 0.0
  %129 = vmatpush1.msra.mxu0 0.0
  %130 = vmatprep.subr.mxu0 0.0
  %131 = vmatpush1.msra.mxu0 0.0
  %132 = vmatprep.subr.mxu0 0.0
  %133 = vmatpush1.msra.mxu0 0.0
  %134 = vmatprep.subr.mxu0 0.0
  %135 = vmatpush1.msra.mxu0 0.0
  %136 = vmatprep.mubr.f32.mxu0 0.0
  %137 = vmatmul.mubr.f32.gmra.mrb[0].mxu0 %v70
  %v138 = vpop.f32.mrb[0].mxu0
  %v139 = vadd.f32 %v66, %v138
  %v140 = vpop.f32.mrb[0].mxu0
  %141 = vdwg.mxu0
  %v142 = vtanh.pop %v139
  %v143 = vld [vmem:[%s3] sm:$0xff]
  %v144 = vld [vmem:[%s3 + $0x8] sm:$0xff]
  %v145 = vld [vmem:[%s4] sm:$0x1]
  %v147 = vlaneseq
  %v148 = vshrl.u32 %v147, 7
  %v149 = vsub.s32 0, %v148
  %v150 = vrot.slane %v145, %v149
  %v153 = vsel %vm68, %v142, 0
  %155 = vmatprep.subr.mxu0 0.0
  %156 = vmatpush1.msra.mxu0 %v143
  %157 = vmatprep.subr.mxu0 0.0
  %158 = vmatpush1.msra.mxu0 %v144
  %159 = vmatprep.subr.mxu0 0.0
  %160 = vmatpush1.msra.mxu0 0.0
  %161 = vmatprep.subr.mxu0 0.0
  %162 = vmatpush1.msra.mxu0 0.0
  %163 = vmatprep.subr.mxu0 0.0
  %164 = vmatpush1.msra.mxu0 0.0
  %165 = vmatprep.subr.mxu0 0.0
  %166 = vmatpush1.msra.mxu0 0.0
  %167 = vmatprep.subr.mxu0 0.0
  %168 = vmatpush1.msra.mxu0 0.0
  %169 = vmatprep.subr.mxu0 0.0
  %170 = vmatpush1.msra.mxu0 0.0
  %171 = vmatprep.subr.mxu0 0.0
  %172 = vmatpush1.msra.mxu0 0.0
  %173 = vmatprep.subr.mxu0 0.0
  %174 = vmatpush1.msra.mxu0 0.0
  %175 = vmatprep.subr.mxu0 0.0
  %176 = vmatpush1.msra.mxu0 0.0
  %177 = vmatprep.subr.mxu0 0.0
  %178 = vmatpush1.msra.mxu0 0.0
  %179 = vmatprep.subr.mxu0 0.0
  %180 = vmatpush1.msra.mxu0 0.0
  %181 = vmatprep.subr.mxu0 0.0
  %182 = vmatpush1.msra.mxu0 0.0
  %183 = vmatprep.subr.mxu0 0.0
  %184 = vmatpush1.msra.mxu0 0.0
  %185 = vmatprep.subr.mxu0 0.0
  %186 = vmatpush1.msra.mxu0 0.0
  %187 = vmatprep.subr.mxu0 0.0
  %188 = vmatpush1.msra.mxu0 0.0
  %189 = vmatprep.subr.mxu0 0.0
  %190 = vmatpush1.msra.mxu0 0.0
  %191 = vmatprep.subr.mxu0 0.0
  %192 = vmatpush1.msra.mxu0 0.0
  %193 = vmatprep.subr.mxu0 0.0
  %194 = vmatpush1.msra.mxu0 0.0
  %195 = vmatprep.subr.mxu0 0.0
  %196 = vmatpush1.msra.mxu0 0.0
  %197 = vmatprep.subr.mxu0 0.0
  %198 = vmatpush1.msra.mxu0 0.0
  %199 = vmatprep.subr.mxu0 0.0
  %200 = vmatpush1.msra.mxu0 0.0
  %201 = vmatprep.subr.mxu0 0.0
  %202 = vmatpush1.msra.mxu0 0.0
  %203 = vmatprep.subr.mxu0 0.0
  %204 = vmatpush1.msra.mxu0 0.0
  %205 = vmatprep.subr.mxu0 0.0
  %206 = vmatpush1.msra.mxu0 0.0
  %207 = vmatprep.subr.mxu0 0.0
  %208 = vmatpush1.msra.mxu0 0.0
  %209 = vmatprep.subr.mxu0 0.0
  %210 = vmatpush1.msra.mxu0 0.0
  %211 = vmatprep.subr.mxu0 0.0
  %212 = vmatpush1.msra.mxu0 0.0
  %213 = vmatprep.subr.mxu0 0.0
  %214 = vmatpush1.msra.mxu0 0.0
  %215 = vmatprep.subr.mxu0 0.0
  %216 = vmatpush1.msra.mxu0 0.0
  %217 = vmatprep.subr.mxu0 0.0
  %218 = vmatpush1.msra.mxu0 0.0
  %219 = vmatprep.mubr.f32.mxu0 0.0
  %220 = vmatmul.mubr.f32.gmra.mrb[0].mxu0 %v153
  %v221 = vpop.f32.mrb[0].mxu0
  %v222 = vadd.f32 %v150, %v221
  %v223 = vpop.f32.mrb[0].mxu0
  %224 = vdwg.mxu0
  %vm225 = vcmp.ge.f32.partialorder %v222, 0.0
  %v226 = vmul.f32 %v222, 0.2
  %v227 = vsel %vm225, %v222, %v226
  %v228 = vld [vmem:[%s5] sm:$0xff]
  %v229 = vld [vmem:[%s5 + $0x8] sm:$0xff]
  %v230 = vld [vmem:[%s5 + $0x10] sm:$0xff]
  %v231 = vld [vmem:[%s5 + $0x18] sm:$0xff]
  %v232 = vld [vmem:[%s5 + $0x20] sm:$0xff]
  %v233 = vld [vmem:[%s5 + $0x28] sm:$0xff]
  %v234 = vld [vmem:[%s5 + $0x30] sm:$0xff]
  %v235 = vld [vmem:[%s5 + $0x38] sm:$0xff]
  %v236 = vld [vmem:[%s5 + $0x40] sm:$0xff]
  %v237 = vld [vmem:[%s5 + $0x48] sm:$0xff]
  %v238 = vld [vmem:[%s5 + $0x50] sm:$0xff]
  %v239 = vld [vmem:[%s5 + $0x58] sm:$0xff]
  %v240 = vld [vmem:[%s5 + $0x60] sm:$0xff]
  %v241 = vld [vmem:[%s5 + $0x68] sm:$0xff]
  %v242 = vld [vmem:[%s5 + $0x70] sm:$0xff]
  %v243 = vld [vmem:[%s5 + $0x78] sm:$0xff]
  %v244 = vld [vmem:[%s6] sm:$0x1]
  %v246 = vlaneseq
  %v247 = vshrl.u32 %v246, 7
  %v248 = vsub.s32 0, %v247
  %v249 = vrot.slane %v244, %v248
  %251 = vmatprep.subr.mxu0 0.0
  %252 = vmatpush1.msra.mxu0 %v228
  %253 = vmatprep.subr.mxu0 0.0
  %254 = vmatpush1.msra.mxu0 %v229
  %255 = vmatprep.subr.mxu0 0.0
  %256 = vmatpush1.msra.mxu0 %v230
  %257 = vmatprep.subr.mxu0 0.0
  %258 = vmatpush1.msra.mxu0 %v231
  %259 = vmatprep.subr.mxu0 0.0
  %260 = vmatpush1.msra.mxu0 %v232
  %261 = vmatprep.subr.mxu0 0.0
  %262 = vmatpush1.msra.mxu0 %v233
  %263 = vmatprep.subr.mxu0 0.0
  %264 = vmatpush1.msra.mxu0 %v234
  %265 = vmatprep.subr.mxu0 0.0
  %266 = vmatpush1.msra.mxu0 %v235
  %267 = vmatprep.subr.mxu0 0.0
  %268 = vmatpush1.msra.mxu0 %v236
  %269 = vmatprep.subr.mxu0 0.0
  %270 = vmatpush1.msra.mxu0 %v237
  %271 = vmatprep.subr.mxu0 0.0
  %272 = vmatpush1.msra.mxu0 %v238
  %273 = vmatprep.subr.mxu0 0.0
  %274 = vmatpush1.msra.mxu0 %v239
  %275 = vmatprep.subr.mxu0 0.0
  %276 = vmatpush1.msra.mxu0 %v240
  %277 = vmatprep.subr.mxu0 0.0
  %278 = vmatpush1.msra.mxu0 %v241
  %279 = vmatprep.subr.mxu0 0.0
  %280 = vmatpush1.msra.mxu0 %v242
  %281 = vmatprep.subr.mxu0 0.0
  %282 = vmatpush1.msra.mxu0 %v243
  %283 = vmatprep.subr.mxu0 0.0
  %284 = vmatpush1.msra.mxu0 0.0
  %285 = vmatprep.subr.mxu0 0.0
  %286 = vmatpush1.msra.mxu0 0.0
  %287 = vmatprep.subr.mxu0 0.0
  %288 = vmatpush1.msra.mxu0 0.0
  %289 = vmatprep.subr.mxu0 0.0
  %290 = vmatpush1.msra.mxu0 0.0
  %291 = vmatprep.subr.mxu0 0.0
  %292 = vmatpush1.msra.mxu0 0.0
  %293 = vmatprep.subr.mxu0 0.0
  %294 = vmatpush1.msra.mxu0 0.0
  %295 = vmatprep.subr.mxu0 0.0
  %296 = vmatpush1.msra.mxu0 0.0
  %297 = vmatprep.subr.mxu0 0.0
  %298 = vmatpush1.msra.mxu0 0.0
  %299 = vmatprep.subr.mxu0 0.0
  %300 = vmatpush1.msra.mxu0 0.0
  %301 = vmatprep.subr.mxu0 0.0
  %302 = vmatpush1.msra.mxu0 0.0
  %303 = vmatprep.subr.mxu0 0.0
  %304 = vmatpush1.msra.mxu0 0.0
  %305 = vmatprep.subr.mxu0 0.0
  %306 = vmatpush1.msra.mxu0 0.0
  %307 = vmatprep.subr.mxu0 0.0
  %308 = vmatpush1.msra.mxu0 0.0
  %309 = vmatprep.subr.mxu0 0.0
  %310 = vmatpush1.msra.mxu0 0.0
  %311 = vmatprep.subr.mxu0 0.0
  %312 = vmatpush1.msra.mxu0 0.0
  %313 = vmatprep.subr.mxu0 0.0
  %314 = vmatpush1.msra.mxu0 0.0
  %315 = vmatprep.mubr.f32.mxu0 0.0
  %316 = vmatmul.mubr.f32.gmra.mrb[0].mxu0 %v227
  %v317 = vpop.f32.mrb[0].mxu0
  %v318 = vadd.f32 %v249, %v317
  %v319 = vpop.f32.mrb[0].mxu0
  %320 = vdwg.mxu0
  %vm321 = vcmp.ge.f32.partialorder %v318, 0.0
  %v322 = vmul.f32 %v318, 0.2
  %v323 = vsel %vm321, %v318, %v322
  %v324 = vld [vmem:[%s7] sm:$0xff]
  %v325 = vld [vmem:[%s7 + $0x8] sm:$0xff]
  %v326 = vld [vmem:[%s7 + $0x10] sm:$0xff]
  %v327 = vld [vmem:[%s7 + $0x18] sm:$0xff]
  %v328 = vld [vmem:[%s7 + $0x20] sm:$0xff]
  %v329 = vld [vmem:[%s7 + $0x28] sm:$0xff]
  %v330 = vld [vmem:[%s7 + $0x30] sm:$0xff]
  %v331 = vld [vmem:[%s7 + $0x38] sm:$0xff]
  %v332 = vld [vmem:[%s7 + $0x40] sm:$0xff]
  %v333 = vld [vmem:[%s7 + $0x48] sm:$0xff]
  %v334 = vld [vmem:[%s7 + $0x50] sm:$0xff]
  %v335 = vld [vmem:[%s7 + $0x58] sm:$0xff]
  %v336 = vld [vmem:[%s7 + $0x60] sm:$0xff]
  %v337 = vld [vmem:[%s7 + $0x68] sm:$0xff]
  %v338 = vld [vmem:[%s7 + $0x70] sm:$0xff]
  %v339 = vld [vmem:[%s8] sm:$0x1]
  %v341 = vlaneseq
  %v342 = vshrl.u32 %v341, 7
  %v343 = vsub.s32 0, %v342
  %v344 = vrot.slane %v339, %v343
  %vm346 = vcmask 982016
  %v348 = vsel %vm346, %v323, 0
  %350 = vmatprep.subr.mxu0 0.0
  %351 = vmatpush1.msra.mxu0 %v324
  %352 = vmatprep.subr.mxu0 0.0
  %353 = vmatpush1.msra.mxu0 %v325
  %354 = vmatprep.subr.mxu0 0.0
  %355 = vmatpush1.msra.mxu0 %v326
  %356 = vmatprep.subr.mxu0 0.0
  %357 = vmatpush1.msra.mxu0 %v327
  %358 = vmatprep.subr.mxu0 0.0
  %359 = vmatpush1.msra.mxu0 %v328
  %360 = vmatprep.subr.mxu0 0.0
  %361 = vmatpush1.msra.mxu0 %v329
  %362 = vmatprep.subr.mxu0 0.0
  %363 = vmatpush1.msra.mxu0 %v330
  %364 = vmatprep.subr.mxu0 0.0
  %365 = vmatpush1.msra.mxu0 %v331
  %366 = vmatprep.subr.mxu0 0.0
  %367 = vmatpush1.msra.mxu0 %v332
  %368 = vmatprep.subr.mxu0 0.0
  %369 = vmatpush1.msra.mxu0 %v333
  %370 = vmatprep.subr.mxu0 0.0
  %371 = vmatpush1.msra.mxu0 %v334
  %372 = vmatprep.subr.mxu0 0.0
  %373 = vmatpush1.msra.mxu0 %v335
  %374 = vmatprep.subr.mxu0 0.0
  %375 = vmatpush1.msra.mxu0 %v336
  %376 = vmatprep.subr.mxu0 0.0
  %377 = vmatpush1.msra.mxu0 %v337
  %378 = vmatprep.subr.mxu0 0.0
  %379 = vmatpush1.msra.mxu0 %v338
  %380 = vmatprep.subr.mxu0 0.0
  %381 = vmatpush1.msra.mxu0 0.0
  %382 = vmatprep.subr.mxu0 0.0
  %383 = vmatpush1.msra.mxu0 0.0
  %384 = vmatprep.subr.mxu0 0.0
  %385 = vmatpush1.msra.mxu0 0.0
  %386 = vmatprep.subr.mxu0 0.0
  %387 = vmatpush1.msra.mxu0 0.0
  %388 = vmatprep.subr.mxu0 0.0
  %389 = vmatpush1.msra.mxu0 0.0
  %390 = vmatprep.subr.mxu0 0.0
  %391 = vmatpush1.msra.mxu0 0.0
  %392 = vmatprep.subr.mxu0 0.0
  %393 = vmatpush1.msra.mxu0 0.0
  %394 = vmatprep.subr.mxu0 0.0
  %395 = vmatpush1.msra.mxu0 0.0
  %396 = vmatprep.subr.mxu0 0.0
  %397 = vmatpush1.msra.mxu0 0.0
  %398 = vmatprep.subr.mxu0 0.0
  %399 = vmatpush1.msra.mxu0 0.0
  %400 = vmatprep.subr.mxu0 0.0
  %401 = vmatpush1.msra.mxu0 0.0
  %402 = vmatprep.subr.mxu0 0.0
  %403 = vmatpush1.msra.mxu0 0.0
  %404 = vmatprep.subr.mxu0 0.0
  %405 = vmatpush1.msra.mxu0 0.0
  %406 = vmatprep.subr.mxu0 0.0
  %407 = vmatpush1.msra.mxu0 0.0
  %408 = vmatprep.subr.mxu0 0.0
  %409 = vmatpush1.msra.mxu0 0.0
  %410 = vmatprep.subr.mxu0 0.0
  %411 = vmatpush1.msra.mxu0 0.0
  %412 = vmatprep.subr.mxu0 0.0
  %413 = vmatpush1.msra.mxu0 0.0
  %414 = vmatprep.mubr.f32.mxu0 0.0
  %415 = vmatmul.mubr.f32.gmra.mrb[0].mxu0 %v348
  %v416 = vpop.f32.mrb[0].mxu0
  %v417 = vadd.f32 %v344, %v416
  %v418 = vpop.f32.mrb[0].mxu0
  %419 = vdwg.mxu0
  %vm420 = vcmp.ge.f32.partialorder %v417, 0.0
  %v421 = vmul.f32 %v417, 0.2
  %v422 = vsel %vm420, %v417, %v421
  %v423 = vld [vmem:[%s9] sm:$0xff]
  %v424 = vld [vmem:[%s9 + $0x8] sm:$0xff]
  %v425 = vld [vmem:[%s9 + $0x10] sm:$0xff]
  %v426 = vld [vmem:[%s9 + $0x18] sm:$0xff]
  %v427 = vld [vmem:[%s9 + $0x20] sm:$0xff]
  %v428 = vld [vmem:[%s9 + $0x28] sm:$0xff]
  %v429 = vld [vmem:[%s10] sm:$0x1]
  %v431 = vlaneseq
  %v432 = vshrl.u32 %v431, 7
  %v433 = vsub.s32 0, %v432
  %v434 = vrot.slane %v429, %v433
  %vm436 = vcmask 392192
  %v438 = vsel %vm436, %v422, 0
  %440 = vmatprep.subr.mxu0 0.0
  %441 = vmatpush1.msra.mxu0 %v423
  %442 = vmatprep.subr.mxu0 0.0
  %443 = vmatpush1.msra.mxu0 %v424
  %444 = vmatprep.subr.mxu0 0.0
  %445 = vmatpush1.msra.mxu0 %v425
  %446 = vmatprep.subr.mxu0 0.0
  %447 = vmatpush1.msra.mxu0 %v426
  %448 = vmatprep.subr.mxu0 0.0
  %449 = vmatpush1.msra.mxu0 %v427
  %450 = vmatprep.subr.mxu0 0.0
  %451 = vmatpush1.msra.mxu0 %v428
  %452 = vmatprep.subr.mxu0 0.0
  %453 = vmatpush1.msra.mxu0 0.0
  %454 = vmatprep.subr.mxu0 0.0
  %455 = vmatpush1.msra.mxu0 0.0
  %456 = vmatprep.subr.mxu0 0.0
  %457 = vmatpush1.msra.mxu0 0.0
  %458 = vmatprep.subr.mxu0 0.0
  %459 = vmatpush1.msra.mxu0 0.0
  %460 = vmatprep.subr.mxu0 0.0
  %461 = vmatpush1.msra.mxu0 0.0
  %462 = vmatprep.subr.mxu0 0.0
  %463 = vmatpush1.msra.mxu0 0.0
  %464 = vmatprep.subr.mxu0 0.0
  %465 = vmatpush1.msra.mxu0 0.0
  %466 = vmatprep.subr.mxu0 0.0
  %467 = vmatpush1.msra.mxu0 0.0
  %468 = vmatprep.subr.mxu0 0.0
  %469 = vmatpush1.msra.mxu0 0.0
  %470 = vmatprep.subr.mxu0 0.0
  %471 = vmatpush1.msra.mxu0 0.0
  %472 = vmatprep.subr.mxu0 0.0
  %473 = vmatpush1.msra.mxu0 0.0
  %474 = vmatprep.subr.mxu0 0.0
  %475 = vmatpush1.msra.mxu0 0.0
  %476 = vmatprep.subr.mxu0 0.0
  %477 = vmatpush1.msra.mxu0 0.0
  %478 = vmatprep.subr.mxu0 0.0
  %479 = vmatpush1.msra.mxu0 0.0
  %480 = vmatprep.subr.mxu0 0.0
  %481 = vmatpush1.msra.mxu0 0.0
  %482 = vmatprep.subr.mxu0 0.0
  %483 = vmatpush1.msra.mxu0 0.0
  %484 = vmatprep.subr.mxu0 0.0
  %485 = vmatpush1.msra.mxu0 0.0
  %486 = vmatprep.subr.mxu0 0.0
  %487 = vmatpush1.msra.mxu0 0.0
  %488 = vmatprep.subr.mxu0 0.0
  %489 = vmatpush1.msra.mxu0 0.0
  %490 = vmatprep.subr.mxu0 0.0
  %491 = vmatpush1.msra.mxu0 0.0
  %492 = vmatprep.subr.mxu0 0.0
  %493 = vmatpush1.msra.mxu0 0.0
  %494 = vmatprep.subr.mxu0 0.0
  %495 = vmatpush1.msra.mxu0 0.0
  %496 = vmatprep.subr.mxu0 0.0
  %497 = vmatpush1.msra.mxu0 0.0
  %498 = vmatprep.subr.mxu0 0.0
  %499 = vmatpush1.msra.mxu0 0.0
  %500 = vmatprep.subr.mxu0 0.0
  %501 = vmatpush1.msra.mxu0 0.0
  %502 = vmatprep.subr.mxu0 0.0
  %503 = vmatpush1.msra.mxu0 0.0
  %504 = vmatprep.mubr.f32.mxu0 0.0
  %505 = vmatmul.mubr.f32.gmra.mrb[0].mxu0 %v438
  %v506 = vpop.f32.mrb[0].mxu0
  %v507 = vadd.f32 %v434, %v506
  %v508 = vpop.f32.mrb[0].mxu0
  %509 = vdwg.mxu0
  %vm510 = vcmp.ge.f32.partialorder %v507, 0.0
  %v511 = vmul.f32 %v507, 0.2
  %v512 = vsel %vm510, %v507, %v511
  %v513 = vld [vmem:[%s11] sm:$0xff]
  %v514 = vld [vmem:[%s11 + $0x8] sm:$0xff]
  %v515 = vld [vmem:[%s11 + $0x10] sm:$0xff]
  %v516 = vld [vmem:[%s11 + $0x18] sm:$0xff]
  %v517 = vld [vmem:[%s11 + $0x20] sm:$0xff]
  %v518 = vld [vmem:[%s12] sm:$0x1]
  %v520 = vlaneseq
  %v521 = vshrl.u32 %v520, 7
  %v522 = vsub.s32 0, %v521
  %v523 = vrot.slane %v518, %v522
  %vm525 = vcmask 326656
  %v527 = vsel %vm525, %v512, 0
  %529 = vmatprep.subr.mxu0 0.0
  %530 = vmatpush1.msra.mxu0 %v513
  %531 = vmatprep.subr.mxu0 0.0
  %532 = vmatpush1.msra.mxu0 %v514
  %533 = vmatprep.subr.mxu0 0.0
  %534 = vmatpush1.msra.mxu0 %v515
  %535 = vmatprep.subr.mxu0 0.0
  %536 = vmatpush1.msra.mxu0 %v516
  %537 = vmatprep.subr.mxu0 0.0
  %538 = vmatpush1.msra.mxu0 %v517
  %539 = vmatprep.subr.mxu0 0.0
  %540 = vmatpush1.msra.mxu0 0.0
  %541 = vmatprep.subr.mxu0 0.0
  %542 = vmatpush1.msra.mxu0 0.0
  %543 = vmatprep.subr.mxu0 0.0
  %544 = vmatpush1.msra.mxu0 0.0
  %545 = vmatprep.subr.mxu0 0.0
  %546 = vmatpush1.msra.mxu0 0.0
  %547 = vmatprep.subr.mxu0 0.0
  %548 = vmatpush1.msra.mxu0 0.0
  %549 = vmatprep.subr.mxu0 0.0
  %550 = vmatpush1.msra.mxu0 0.0
  %551 = vmatprep.subr.mxu0 0.0
  %552 = vmatpush1.msra.mxu0 0.0
  %553 = vmatprep.subr.mxu0 0.0
  %554 = vmatpush1.msra.mxu0 0.0
  %555 = vmatprep.subr.mxu0 0.0
  %556 = vmatpush1.msra.mxu0 0.0
  %557 = vmatprep.subr.mxu0 0.0
  %558 = vmatpush1.msra.mxu0 0.0
  %559 = vmatprep.subr.mxu0 0.0
  %560 = vmatpush1.msra.mxu0 0.0
  %561 = vmatprep.subr.mxu0 0.0
  %562 = vmatpush1.msra.mxu0 0.0
  %563 = vmatprep.subr.mxu0 0.0
  %564 = vmatpush1.msra.mxu0 0.0
  %565 = vmatprep.subr.mxu0 0.0
  %566 = vmatpush1.msra.mxu0 0.0
  %567 = vmatprep.subr.mxu0 0.0
  %568 = vmatpush1.msra.mxu0 0.0
  %569 = vmatprep.subr.mxu0 0.0
  %570 = vmatpush1.msra.mxu0 0.0
  %571 = vmatprep.subr.mxu0 0.0
  %572 = vmatpush1.msra.mxu0 0.0
  %573 = vmatprep.subr.mxu0 0.0
  %574 = vmatpush1.msra.mxu0 0.0
  %575 = vmatprep.subr.mxu0 0.0
  %576 = vmatpush1.msra.mxu0 0.0
  %577 = vmatprep.subr.mxu0 0.0
  %578 = vmatpush1.msra.mxu0 0.0
  %579 = vmatprep.subr.mxu0 0.0
  %580 = vmatpush1.msra.mxu0 0.0
  %581 = vmatprep.subr.mxu0 0.0
  %582 = vmatpush1.msra.mxu0 0.0
  %583 = vmatprep.subr.mxu0 0.0
  %584 = vmatpush1.msra.mxu0 0.0
  %585 = vmatprep.subr.mxu0 0.0
  %586 = vmatpush1.msra.mxu0 0.0
  %587 = vmatprep.subr.mxu0 0.0
  %588 = vmatpush1.msra.mxu0 0.0
  %589 = vmatprep.subr.mxu0 0.0
  %590 = vmatpush1.msra.mxu0 0.0
  %591 = vmatprep.subr.mxu0 0.0
  %592 = vmatpush1.msra.mxu0 0.0
  %593 = vmatprep.mubr.f32.mxu0 0.0
  %594 = vmatmul.mubr.f32.gmra.mrb[0].mxu0 %v527
  %v595 = vpop.f32.mrb[0].mxu0
  %v596 = vadd.f32 %v523, %v595
  %v597 = vpop.f32.mrb[0].mxu0
  %598 = vdwg.mxu0
  %vm599 = vcmp.ge.f32.partialorder %v596, 0.0
  %v600 = vmul.f32 %v596, 0.2
  %v601 = vsel %vm599, %v596, %v600
  %v602 = vld [vmem:[%s13] sm:$0xff]
  %v603 = vld [vmem:[%s13 + $0x8] sm:$0xff]
  %v604 = vld [vmem:[%s13 + $0x10] sm:$0xff]
  %v605 = vld [vmem:[%s13 + $0x18] sm:$0xff]
  %v606 = vld [vmem:[%s14] sm:$0x1]
  %v608 = vlaneseq
  %v609 = vshrl.u32 %v608, 7
  %v610 = vsub.s32 0, %v609
  %v611 = vrot.slane %v606, %v610
  %vm613 = vcmask 261120
  %v615 = vsel %vm613, %v601, 0
  %617 = vmatprep.subr.mxu0 0.0
  %618 = vmatpush1.msra.mxu0 %v602
  %619 = vmatprep.subr.mxu0 0.0
  %620 = vmatpush1.msra.mxu0 %v603
  %621 = vmatprep.subr.mxu0 0.0
  %622 = vmatpush1.msra.mxu0 %v604
  %623 = vmatprep.subr.mxu0 0.0
  %624 = vmatpush1.msra.mxu0 %v605
  %625 = vmatprep.subr.mxu0 0.0
  %626 = vmatpush1.msra.mxu0 0.0
  %627 = vmatprep.subr.mxu0 0.0
  %628 = vmatpush1.msra.mxu0 0.0
  %629 = vmatprep.subr.mxu0 0.0
  %630 = vmatpush1.msra.mxu0 0.0
  %631 = vmatprep.subr.mxu0 0.0
  %632 = vmatpush1.msra.mxu0 0.0
  %633 = vmatprep.subr.mxu0 0.0
  %634 = vmatpush1.msra.mxu0 0.0
  %635 = vmatprep.subr.mxu0 0.0
  %636 = vmatpush1.msra.mxu0 0.0
  %637 = vmatprep.subr.mxu0 0.0
  %638 = vmatpush1.msra.mxu0 0.0
  %639 = vmatprep.subr.mxu0 0.0
  %640 = vmatpush1.msra.mxu0 0.0
  %641 = vmatprep.subr.mxu0 0.0
  %642 = vmatpush1.msra.mxu0 0.0
  %643 = vmatprep.subr.mxu0 0.0
  %644 = vmatpush1.msra.mxu0 0.0
  %645 = vmatprep.subr.mxu0 0.0
  %646 = vmatpush1.msra.mxu0 0.0
  %647 = vmatprep.subr.mxu0 0.0
  %648 = vmatpush1.msra.mxu0 0.0
  %649 = vmatprep.subr.mxu0 0.0
  %650 = vmatpush1.msra.mxu0 0.0
  %651 = vmatprep.subr.mxu0 0.0
  %652 = vmatpush1.msra.mxu0 0.0
  %653 = vmatprep.subr.mxu0 0.0
  %654 = vmatpush1.msra.mxu0 0.0
  %655 = vmatprep.subr.mxu0 0.0
  %656 = vmatpush1.msra.mxu0 0.0
  %657 = vmatprep.subr.mxu0 0.0
  %658 = vmatpush1.msra.mxu0 0.0
  %659 = vmatprep.subr.mxu0 0.0
  %660 = vmatpush1.msra.mxu0 0.0
  %661 = vmatprep.subr.mxu0 0.0
  %662 = vmatpush1.msra.mxu0 0.0
  %663 = vmatprep.subr.mxu0 0.0
  %664 = vmatpush1.msra.mxu0 0.0
  %665 = vmatprep.subr.mxu0 0.0
  %666 = vmatpush1.msra.mxu0 0.0
  %667 = vmatprep.subr.mxu0 0.0
  %668 = vmatpush1.msra.mxu0 0.0
  %669 = vmatprep.subr.mxu0 0.0
  %670 = vmatpush1.msra.mxu0 0.0
  %671 = vmatprep.subr.mxu0 0.0
  %672 = vmatpush1.msra.mxu0 0.0
  %673 = vmatprep.subr.mxu0 0.0
  %674 = vmatpush1.msra.mxu0 0.0
  %675 = vmatprep.subr.mxu0 0.0
  %676 = vmatpush1.msra.mxu0 0.0
  %677 = vmatprep.subr.mxu0 0.0
  %678 = vmatpush1.msra.mxu0 0.0
  %679 = vmatprep.subr.mxu0 0.0
  %680 = vmatpush1.msra.mxu0 0.0
  %681 = vmatprep.mubr.f32.mxu0 0.0
  %682 = vmatmul.mubr.f32.gmra.mrb[0].mxu0 %v615
  %v683 = vpop.f32.mrb[0].mxu0
  %v684 = vadd.f32 %v611, %v683
  %v685 = vpop.f32.mrb[0].mxu0
  %686 = vdwg.mxu0
  %v687 = vtanh.pop %v684
  %v688 = vld [vmem:[%s15] sm:$0xff]
  %v689 = vld [vmem:[%s15 + $0x8] sm:$0xff]
  %v690 = vld [vmem:[#allocation2] sm:$0x1]
  %v692 = vlaneseq
  %v693 = vshrl.u32 %v692, 7
  %v694 = vsub.s32 0, %v693
  %v695 = vrot.slane %v690, %v694
  %v698 = vsel %vm68, %v687, 0
  %700 = vmatprep.subr.mxu0 0.0
  %701 = vmatpush1.msra.mxu0 %v688
  %702 = vmatprep.subr.mxu0 0.0
  %703 = vmatpush1.msra.mxu0 %v689
  %704 = vmatprep.subr.mxu0 0.0
  %705 = vmatpush1.msra.mxu0 0.0
  %706 = vmatprep.subr.mxu0 0.0
  %707 = vmatpush1.msra.mxu0 0.0
  %708 = vmatprep.subr.mxu0 0.0
  %709 = vmatpush1.msra.mxu0 0.0
  %710 = vmatprep.subr.mxu0 0.0
  %711 = vmatpush1.msra.mxu0 0.0
  %712 = vmatprep.subr.mxu0 0.0
  %713 = vmatpush1.msra.mxu0 0.0
  %714 = vmatprep.subr.mxu0 0.0
  %715 = vmatpush1.msra.mxu0 0.0
  %716 = vmatprep.subr.mxu0 0.0
  %717 = vmatpush1.msra.mxu0 0.0
  %718 = vmatprep.subr.mxu0 0.0
  %719 = vmatpush1.msra.mxu0 0.0
  %720 = vmatprep.subr.mxu0 0.0
  %721 = vmatpush1.msra.mxu0 0.0
  %722 = vmatprep.subr.mxu0 0.0
  %723 = vmatpush1.msra.mxu0 0.0
  %724 = vmatprep.subr.mxu0 0.0
  %725 = vmatpush1.msra.mxu0 0.0
  %726 = vmatprep.subr.mxu0 0.0
  %727 = vmatpush1.msra.mxu0 0.0
  %728 = vmatprep.subr.mxu0 0.0
  %729 = vmatpush1.msra.mxu0 0.0
  %730 = vmatprep.subr.mxu0 0.0
  %731 = vmatpush1.msra.mxu0 0.0
  %732 = vmatprep.subr.mxu0 0.0
  %733 = vmatpush1.msra.mxu0 0.0
  %734 = vmatprep.subr.mxu0 0.0
  %735 = vmatpush1.msra.mxu0 0.0
  %736 = vmatprep.subr.mxu0 0.0
  %737 = vmatpush1.msra.mxu0 0.0
  %738 = vmatprep.subr.mxu0 0.0
  %739 = vmatpush1.msra.mxu0 0.0
  %740 = vmatprep.subr.mxu0 0.0
  %741 = vmatpush1.msra.mxu0 0.0
  %742 = vmatprep.subr.mxu0 0.0
  %743 = vmatpush1.msra.mxu0 0.0
  %744 = vmatprep.subr.mxu0 0.0
  %745 = vmatpush1.msra.mxu0 0.0
  %746 = vmatprep.subr.mxu0 0.0
  %747 = vmatpush1.msra.mxu0 0.0
  %748 = vmatprep.subr.mxu0 0.0
  %749 = vmatpush1.msra.mxu0 0.0
  %750 = vmatprep.subr.mxu0 0.0
  %751 = vmatpush1.msra.mxu0 0.0
  %752 = vmatprep.subr.mxu0 0.0
  %753 = vmatpush1.msra.mxu0 0.0
  %754 = vmatprep.subr.mxu0 0.0
  %755 = vmatpush1.msra.mxu0 0.0
  %756 = vmatprep.subr.mxu0 0.0
  %757 = vmatpush1.msra.mxu0 0.0
  %758 = vmatprep.subr.mxu0 0.0
  %759 = vmatpush1.msra.mxu0 0.0
  %760 = vmatprep.subr.mxu0 0.0
  %761 = vmatpush1.msra.mxu0 0.0
  %762 = vmatprep.subr.mxu0 0.0
  %763 = vmatpush1.msra.mxu0 0.0
  %764 = vmatprep.mubr.f32.mxu0 0.0
  %765 = vmatmul.mubr.f32.gmra.mrb[0].mxu0 %v698
  %v766 = vpop.f32.mrb[0].mxu0
  %v767 = vadd.f32 %v695, %v766
  %v768 = vpop.f32.mrb[0].mxu0
  %769 = vdwg.mxu0
  %v770 = vxor.u32 %v767, 2147483648
  %v771 = vmul.f32 %v770, 1.442695
  %v772 = vpow.pop %v771
  %v773 = vadd.f32 %v772, 1.0
  %v774 = vrcp.pop %v773
  %v775 = vmul.f32 1.0, %v774
  %vm776 = vcmask 3072
  %777 = vst.msk [vmem:[%s17] sm:$0xf] %vm776, %v775
  // Predicated region
  $region70: #{tpu_custom_call.1} parent=0 // pred_check
    _
  $region71: #{tpu_custom_call.1} parent=0 // pred_check_branch
    %779 = sbr.rel (0) target = $region73
  $region72: #{tpu_custom_call.1} parent=0 // pred_region
    _
  $region73: #{tpu_custom_call.1} parent=0 // pred_fallthru
    _
  // Predicated region
  $region74: #{tpu_custom_call.1} parent=0 // pred_check
    _
  $region75: #{tpu_custom_call.1} parent=0 // pred_check_branch
    %781 = sbr.rel (0) target = $region77
  $region76: #{tpu_custom_call.1} parent=0 // pred_region
    _
  $region77: #{tpu_custom_call.1} parent=0 // pred_fallthru
    _

</llo_original>
